<compile_context>
chip_gen: v6e
topology: v6e:2x2x1
jax: 0.10.0
libtpu: 0.0.40
codegen_flags: <defaults>
</compile_context>

<pallas_src>
from functools import partial
from typing import NamedTuple

import jax
import jax.numpy as jnp
from jax.experimental import pallas as pl
from jax.experimental.pallas import tpu as pltpu

BN_EPS = 1e-5  # PyTorch BatchNorm1d default eps


def _round_up(n, m):
    return ((n + m - 1) // m) * m


def _cdiv(a, b):
    return (a + b - 1) // b


def _vmem_capacity_bytes():
    try:
        return int(pltpu.get_tpu_info().vmem_capacity_bytes)
    except Exception:
        return 64 * 1024 * 1024  # conservative fallback (v7x per-TC)


def _softplus(x):
    # Numerically-stable softplus; matches torch.nn.functional.softplus
    # (beta=1, threshold=20) to <2e-9 for all finite x.
    return jnp.maximum(x, 0.0) + jnp.log1p(jnp.exp(-jnp.abs(x)))


class EncoderMeta(NamedTuple):
    vocab_size: int
    num_topics: int
    tk: int


def _encoder_kernel(x_ref, w1_ref, b1_ref, w2_ref, b2_ref, wh_ref, bh_ref,
                    out_ref, acc_ref):
    k = pl.program_id(0)
    nk = pl.num_programs(0)

    @pl.when(k == 0)
    def _init():
        acc_ref[...] = jnp.zeros_like(acc_ref)

    # fc1 partial product for this K tile (f32 accumulation on the MXU).
    # x stays f32 in HBM; cast the tile to the (possibly bf16) weight dtype.
    acc_ref[...] += jnp.dot(x_ref[...].astype(w1_ref.dtype), w1_ref[...],
                            preferred_element_type=jnp.float32)

    @pl.when(k == nk - 1)
    def _finalize():
        # fc1 bias + softplus (bias added once, after the full K reduction).
        h = _softplus(acc_ref[...] + b1_ref[...])                     # (B, Hp) f32

        # fc2 + softplus
        h = _softplus(
            jnp.dot(h.astype(w2_ref.dtype), w2_ref[...],
                    preferred_element_type=jnp.float32) + b2_ref[...])

        # dropout: eval-mode identity.
        # TODO(synk): training-mode stochastic dropout (pltpu.prng_*) not emitted.

        # Fused fcmu|fclv head: one (Hp, 2*Tp) matmul instead of two tiny ones.
        z = (jnp.dot(h.astype(wh_ref.dtype), wh_ref[...],
                     preferred_element_type=jnp.float32) + bh_ref[...])

        # BatchNorm1d (affine=False), training-mode batch statistics, biased
        # variance (as in PyTorch's forward).  Zero-padded columns normalize
        # to 0 harmlessly (0 * rsqrt(eps) = 0).
        # TODO(synk): running-stats eval-mode BN not implemented (batch stats only).
        mean = jnp.mean(z, axis=0, keepdims=True)
        var = jnp.mean((z - mean) * (z - mean), axis=0, keepdims=True)
        zn = (z - mean) * jax.lax.rsqrt(var + BN_EPS)

        # Lane-aligned halves: [loc | exp(0.5*logvar)].  Both stores are full
        # multiples of 128 lanes; exp only runs on the lv half.
        tp = out_ref.shape[1] // 2
        out_ref[:, :tp] = zn[:, :tp].astype(out_ref.dtype)
        out_ref[:, tp:] = jnp.exp(0.5 * zn[:, tp:]).astype(out_ref.dtype)


def prepare_params(params, *, matmul_dtype=jnp.bfloat16, tk=None, batch_hint=128):
    """One-time pad + cast of the Encoder weights (hoisted out of the forward).

    params: dict of pre-transposed (in, out) weights w1,b1,w2,b2,wmu,bmu,wlv,blv.
    Returns (arrays_dict, EncoderMeta).  The padded regions are zero-filled,
    which keeps the K-reduction / head math numerically inert.
    """
    V, H = params["w1"].shape
    T = params["wmu"].shape[1]
    Hp = _round_up(H, 128)
    Tp = _round_up(T, 128)
    OUTp = 2 * Tp
    wbytes = jnp.dtype(matmul_dtype).itemsize

    Vb = _round_up(V, 128)
    if tk is None:
        # Generation-aware K-tile sizing: fill most of VMEM with the streamed
        # x / w1 double buffers (bigger tiles amortize per-grid-step overhead).
        cap = _vmem_capacity_bytes()
        # 128 MiB parts (v5e/v6e): up to ~100 MiB.  64 MiB parts (v7x per-TC):
        # head-roomed <= ~52 MiB for Mosaic internal scratch.
        budget = 100 * 2**20 if cap >= 96 * 2**20 else min(52 * 2**20, int(cap * 0.8))
        fixed = (2 * (Hp * Hp + Hp * OUTp) * wbytes   # resident w2 / fused head
                 + 2 * (2 * Hp + OUTp) * 4            # biases
                 + 2 * batch_hint * OUTp * 4          # output slab (dbl-buffered)
                 + batch_hint * Hp * 4                # f32 accumulator scratch
                 + 8 * 2**20)                         # Mosaic internal scratch headroom
        per_k = 2 * (batch_hint * 4 + Hp * wbytes)    # dbl-buffered x(f32) + w1 per K column
        tk_cap = max(128, ((budget - fixed) // per_k) // 128 * 128)
        tk_cap = min(tk_cap, 4096, Vb)
        nk = _cdiv(Vb, tk_cap)
        tk = _round_up(_cdiv(Vb, nk), 128)
    else:
        tk = _round_up(tk, 128)
    Vp = _round_up(V, tk)

    f32 = jnp.float32
    w1 = (jnp.zeros((Vp, Hp), f32)
          .at[:V, :H].set(jnp.asarray(params["w1"], f32)).astype(matmul_dtype))
    b1 = jnp.zeros((1, Hp), f32).at[0, :H].set(jnp.asarray(params["b1"], f32))
    w2 = (jnp.zeros((Hp, Hp), f32)
          .at[:H, :H].set(jnp.asarray(params["w2"], f32)).astype(matmul_dtype))
    b2 = jnp.zeros((1, Hp), f32).at[0, :H].set(jnp.asarray(params["b2"], f32))
    wh = (jnp.zeros((Hp, OUTp), f32)
          .at[:H, :T].set(jnp.asarray(params["wmu"], f32))
          .at[:H, Tp:Tp + T].set(jnp.asarray(params["wlv"], f32))
          .astype(matmul_dtype))
    bh = (jnp.zeros((1, OUTp), f32)
          .at[0, :T].set(jnp.asarray(params["bmu"], f32))
          .at[0, Tp:Tp + T].set(jnp.asarray(params["blv"], f32)))

    arrays = dict(w1=w1, b1=b1, w2=w2, b2=b2, wh=wh, bh=bh)
    return arrays, EncoderMeta(vocab_size=V, num_topics=T, tk=tk)


@partial(jax.jit, static_argnums=(2,))
def encoder_forward(x, arrs, meta):
    """x: (B, V) float.  arrs/meta: output of prepare_params.

    Returns (logtheta_loc, logtheta_scale), each (B, num_topics) float32.
    """
    B, V = x.shape
    assert V == meta.vocab_size
    Vp, Hp = arrs["w1"].shape
    OUTp = arrs["wh"].shape[1]
    Tp = OUTp // 2
    T = meta.num_topics
    tk = meta.tk
    nk = Vp // tk

    x = x.astype(jnp.float32)
    xp = x if Vp == V else jnp.pad(x, ((0, 0), (0, Vp - V)))

    wbytes = arrs["w1"].dtype.itemsize
    # VMEM budget: double-buffered streaming tiles + resident weights + scratch.
    est = (2 * (B * tk * 4 + tk * Hp * wbytes)      # pipelined x / w1 tiles
           + 2 * (Hp * Hp + Hp * OUTp) * wbytes     # resident w2 / fused head
           + 2 * (2 * Hp + OUTp) * 4                # biases
           + 2 * B * OUTp * 4                       # output slab
           + B * Hp * 4)                            # f32 accumulator scratch
    cap = _vmem_capacity_bytes()
    hard_cap = 100 * 2**20 if cap >= 96 * 2**20 else min(52 * 2**20, int(cap * 0.8))
    vmem_limit = int(min(max(2 * est, 32 * 2**20), hard_cap))

    cost = pl.CostEstimate(
        flops=2 * B * (Vp * Hp + Hp * Hp + Hp * OUTp),
        transcendentals=B * (2 * Hp + Tp),
        bytes_accessed=(xp.size * 4
                        + (arrs["w1"].size + arrs["w2"].size + arrs["wh"].size) * wbytes
                        + (arrs["b1"].size + arrs["b2"].size + arrs["bh"].size
                           + B * OUTp) * 4),
    )

    # TODO(synk): for v7x megacore / very large B, add a leading 'parallel'
    # batch-block grid axis with a two-pass BatchNorm (per-block sum/sumsq
    # combined in an epilogue) so the second TensorCore isn't idle.
    # TODO(synk): mark the constant-index resident operands (b1,w2,b2,wh,bh)
    # with pipeline_mode=pl.Buffered(1) once single-buffering is confirmed;
    # negligible at Hp=128 here.
    out = pl.pallas_call(
        _encoder_kernel,
        out_shape=jax.ShapeDtypeStruct((B, OUTp), jnp.float32),
        grid_spec=pltpu.PrefetchScalarGridSpec(
            num_scalar_prefetch=0,
            grid=(nk,),
            in_specs=[
                pl.BlockSpec((B, tk), lambda k: (0, k)),     # x tile (streams)
                pl.BlockSpec((tk, Hp), lambda k: (k, 0)),    # w1 tile (streams)
                pl.BlockSpec((1, Hp), lambda k: (0, 0)),     # b1 (resident)
                pl.BlockSpec((Hp, Hp), lambda k: (0, 0)),    # w2 (resident)
                pl.BlockSpec((1, Hp), lambda k: (0, 0)),     # b2 (resident)
                pl.BlockSpec((Hp, OUTp), lambda k: (0, 0)),  # fused head W
                pl.BlockSpec((1, OUTp), lambda k: (0, 0)),   # fused head b
            ],
            out_specs=pl.BlockSpec((B, OUTp), lambda k: (0, 0)),
            scratch_shapes=[pltpu.VMEM((B, Hp), jnp.float32)],
        ),
        compiler_params=pltpu.CompilerParams(
            dimension_semantics=("arbitrary",),   # K (reduction) axis
            vmem_limit_bytes=vmem_limit,
        ),
        cost_estimate=cost,
    )(xp, arrs["w1"], arrs["b1"], arrs["w2"], arrs["b2"], arrs["wh"], arrs["bh"])

    loc = out[:, :T]              # column 0 is lane-aligned
    scale = out[:, Tp:Tp + T]     # Tp is a multiple of 128 -> aligned slice
    return loc, scale


def init_params(key, vocab_size, hidden, num_topics):
    ks = jax.random.split(key, 8)

    def lin(kw, kb, fan_in, fan_out):
        bound = 1.0 / jnp.sqrt(fan_in)
        w = jax.random.uniform(kw, (fan_in, fan_out), jnp.float32, -bound, bound)
        b = jax.random.uniform(kb, (fan_out,), jnp.float32, -bound, bound)
        return w, b

    w1, b1 = lin(ks[0], ks[1], vocab_size, hidden)
    w2, b2 = lin(ks[2], ks[3], hidden, hidden)
    wmu, bmu = lin(ks[4], ks[5], hidden, num_topics)
    wlv, blv = lin(ks[6], ks[7], hidden, num_topics)
    return dict(w1=w1, b1=b1, w2=w2, b2=b2,
                wmu=wmu, bmu=bmu, wlv=wlv, blv=blv)


def _reference(x, p):
    # Pure-JAX reference for a sanity check (f32).
    h = jax.nn.softplus(x @ p["w1"] + p["b1"])
    h = jax.nn.softplus(h @ p["w2"] + p["b2"])
    mu = h @ p["wmu"] + p["bmu"]
    lv = h @ p["wlv"] + p["blv"]

    def bn(t):
        m = t.mean(0, keepdims=True)
        v = ((t - m) ** 2).mean(0, keepdims=True)
        return (t - m) / jnp.sqrt(v + BN_EPS)

    return bn(mu), jnp.exp(0.5 * bn(lv))


if __name__ == "__main__":
    key = jax.random.PRNGKey(0)
    k_x, k_p = jax.random.split(key)

    # batch, vocab_size, hidden, num_topics (deliberately non-multiples of 128
    # so the padding path is exercised).
    B, V, H, T = 8, 384, 48, 10
    # Bag-of-words style non-negative counts.
    x = jax.random.uniform(k_x, (B, V), jnp.float32, 0.0, 3.0)
    params = init_params(k_p, V, H, T)
    loc_ref, scale_ref = _reference(x, params)

    # f32 path; tk=128 -> 3-step K reduction grid (exercises the accumulator).
    arrs32, meta32 = prepare_params(params, matmul_dtype=jnp.float32, tk=128)
    loc, scale = encoder_forward(x, arrs32, meta32)
    jax.block_until_ready((loc, scale))
    assert loc.shape == (B, T) and scale.shape == (B, T)
    assert jnp.allclose(loc, loc_ref, atol=1e-3, rtol=1e-3)
    assert jnp.allclose(scale, scale_ref, atol=1e-3, rtol=1e-3)

    # Default path: bf16 streamed weights, generation-aware tk (x stays f32;
    # MXU accumulation and all elementwise math stay f32).  Loose sanity bound
    # vs the f32 reference.
    arrs, meta = prepare_params(params)
    loc_bf, scale_bf = encoder_forward(x, arrs, meta)
    jax.block_until_ready((loc_bf, scale_bf))
    assert jnp.all(jnp.isfinite(loc_bf)) and jnp.all(jnp.isfinite(scale_bf))
    assert float(jnp.max(jnp.abs(loc_bf - loc_ref))) < 1.0
    assert float(jnp.max(jnp.abs(scale_bf - scale_ref))) < 1.0

    print("KERNEL_OK")
</pallas_src>

<mosaic_0001>
module attributes {stable_mosaic.version = 11 : i64} {
  func.func @_encoder_kernel(%arg0: i32, %arg1: memref<8x128xf32, #tpu.memory_space<vmem>>, %arg2: memref<128x128xf32, #tpu.memory_space<vmem>>, %arg3: memref<1x128xf32, #tpu.memory_space<vmem>>, %arg4: memref<128x128xf32, #tpu.memory_space<vmem>>, %arg5: memref<1x128xf32, #tpu.memory_space<vmem>>, %arg6: memref<128x256xf32, #tpu.memory_space<vmem>>, %arg7: memref<1x256xf32, #tpu.memory_space<vmem>>, %arg8: memref<8x256xf32, #tpu.memory_space<vmem>>, %arg9: memref<8x128xf32, #tpu.memory_space<vmem>>) attributes {dimension_semantics = [#tpu.dimension_semantics<arbitrary>], iteration_bounds = array<i64: 3>, scalar_prefetch = 0 : i64, scratch_operands = 1 : i64, tpu.core_type = #tpu.core_type<tc>, window_params = [{transform_indices = @transform_0, window_bounds = array<i64: 8, 128>}, {transform_indices = @transform_1, window_bounds = array<i64: 128, 128>}, {pipeline_mode = #tpu.pipeline_mode<synchronous>, transform_indices = @transform_2, window_bounds = array<i64: 1, 128>}, {pipeline_mode = #tpu.pipeline_mode<synchronous>, transform_indices = @transform_3, window_bounds = array<i64: 128, 128>}, {pipeline_mode = #tpu.pipeline_mode<synchronous>, transform_indices = @transform_4, window_bounds = array<i64: 1, 128>}, {pipeline_mode = #tpu.pipeline_mode<synchronous>, transform_indices = @transform_5, window_bounds = array<i64: 128, 256>}, {pipeline_mode = #tpu.pipeline_mode<synchronous>, transform_indices = @transform_6, window_bounds = array<i64: 1, 256>}, {pipeline_mode = #tpu.pipeline_mode<synchronous>, transform_indices = @transform_7, window_bounds = array<i64: 8, 256>}]} {
    %c0_i32 = arith.constant 0 : i32
    %0 = arith.cmpi eq, %arg0, %c0_i32 : i32
    %1 = arith.extui %0 : i1 to i32
    %c0_i32_0 = arith.constant 0 : i32
    %2 = arith.cmpi ne, %1, %c0_i32_0 : i32
    scf.if %2 {
      %cst_9 = arith.constant 0.000000e+00 : f32
      %12 = vector.broadcast %cst_9 : f32 to vector<8x128xf32>
      %c0_10 = arith.constant 0 : index
      %c0_11 = arith.constant 0 : index
      %13 = vector.load %arg9[%c0_10, %c0_11] : memref<8x128xf32, #tpu.memory_space<vmem>>, vector<8x128xf32>
      tpu.vector_store %arg9[%c0_10, %c0_11], %12 {strides = array<i32>} : memref<8x128xf32, #tpu.memory_space<vmem>>, vector<8x128xf32>,
    } else {
    }
    %c0 = arith.constant 0 : index
    %c0_1 = arith.constant 0 : index
    %3 = vector.load %arg9[%c0, %c0_1] : memref<8x128xf32, #tpu.memory_space<vmem>>, vector<8x128xf32>
    %c0_2 = arith.constant 0 : index
    %c0_3 = arith.constant 0 : index
    %4 = vector.load %arg1[%c0_2, %c0_3] : memref<8x128xf32, #tpu.memory_space<vmem>>, vector<8x128xf32>
    %c0_4 = arith.constant 0 : index
    %c0_5 = arith.constant 0 : index
    %5 = vector.load %arg2[%c0_4, %c0_5] : memref<128x128xf32, #tpu.memory_space<vmem>>, vector<128x128xf32>
    %cst = arith.constant dense<0.000000e+00> : vector<8x128xf32>
    %6 = tpu.matmul %4, %5, %cst {dimension_numbers = #tpu.dot_dimension_numbers<[1], [0], [0], [1], [0, 0, 1, 1], [], []>} : vector<8x128xf32>, vector<128x128xf32>, vector<8x128xf32> -> vector<8x128xf32>
    %7 = arith.addf %3, %6 : vector<8x128xf32>
    %c0_6 = arith.constant 0 : index
    %c0_7 = arith.constant 0 : index
    %8 = vector.load %arg9[%c0_6, %c0_7] : memref<8x128xf32, #tpu.memory_space<vmem>>, vector<8x128xf32>
    tpu.vector_store %arg9[%c0_6, %c0_7], %7 {strides = array<i32>} : memref<8x128xf32, #tpu.memory_space<vmem>>, vector<8x128xf32>,
    %c2_i32 = arith.constant 2 : i32
    %9 = arith.cmpi eq, %arg0, %c2_i32 : i32
    %10 = arith.extui %9 : i1 to i32
    %c0_i32_8 = arith.constant 0 : i32
    %11 = arith.cmpi ne, %10, %c0_i32_8 : i32
    scf.if %11 {
      %c0_9 = arith.constant 0 : index
      %c0_10 = arith.constant 0 : index
      %12 = vector.load %arg9[%c0_9, %c0_10] : memref<8x128xf32, #tpu.memory_space<vmem>>, vector<8x128xf32>
      %c0_11 = arith.constant 0 : index
      %c0_12 = arith.constant 0 : index
      %13 = vector.load %arg3[%c0_11, %c0_12] : memref<1x128xf32, #tpu.memory_space<vmem>>, vector<1x128xf32>
      %14 = vector.broadcast %13 : vector<1x128xf32> to vector<8x128xf32>
      %15 = arith.addf %12, %14 : vector<8x128xf32>
      %cst_13 = arith.constant 0.000000e+00 : f32
      %16 = vector.broadcast %cst_13 : f32 to vector<8x128xf32>
      %17 = arith.maximumf %15, %16 : vector<8x128xf32>
      %18 = math.absf %15 : vector<8x128xf32>
      %cst_14 = arith.constant 0.000000e+00 : f32
      %19 = vector.broadcast %cst_14 : f32 to vector<8x128xf32>
      %20 = arith.subf %19, %18 : vector<8x128xf32>
      %21 = math.exp %20 : vector<8x128xf32>
      %22 = math.log1p %21 : vector<8x128xf32>
      %23 = arith.addf %17, %22 : vector<8x128xf32>
      %c0_15 = arith.constant 0 : index
      %c0_16 = arith.constant 0 : index
      %24 = vector.load %arg4[%c0_15, %c0_16] : memref<128x128xf32, #tpu.memory_space<vmem>>, vector<128x128xf32>
      %cst_17 = arith.constant dense<0.000000e+00> : vector<8x128xf32>
      %25 = tpu.matmul %23, %24, %cst_17 {dimension_numbers = #tpu.dot_dimension_numbers<[1], [0], [0], [1], [0, 0, 1, 1], [], []>} : vector<8x128xf32>, vector<128x128xf32>, vector<8x128xf32> -> vector<8x128xf32>
      %c0_18 = arith.constant 0 : index
      %c0_19 = arith.constant 0 : index
      %26 = vector.load %arg5[%c0_18, %c0_19] : memref<1x128xf32, #tpu.memory_space<vmem>>, vector<1x128xf32>
      %27 = vector.broadcast %26 : vector<1x128xf32> to vector<8x128xf32>
      %28 = arith.addf %25, %27 : vector<8x128xf32>
      %cst_20 = arith.constant 0.000000e+00 : f32
      %29 = vector.broadcast %cst_20 : f32 to vector<8x128xf32>
      %30 = arith.maximumf %28, %29 : vector<8x128xf32>
      %31 = math.absf %28 : vector<8x128xf32>
      %cst_21 = arith.constant 0.000000e+00 : f32
      %32 = vector.broadcast %cst_21 : f32 to vector<8x128xf32>
      %33 = arith.subf %32, %31 : vector<8x128xf32>
      %34 = math.exp %33 : vector<8x128xf32>
      %35 = math.log1p %34 : vector<8x128xf32>
      %36 = arith.addf %30, %35 : vector<8x128xf32>
      %c0_22 = arith.constant 0 : index
      %c0_23 = arith.constant 0 : index
      %37 = vector.load %arg6[%c0_22, %c0_23] : memref<128x256xf32, #tpu.memory_space<vmem>>, vector<128x256xf32>
      %cst_24 = arith.constant dense<0.000000e+00> : vector<8x256xf32>
      %38 = tpu.matmul %36, %37, %cst_24 {dimension_numbers = #tpu.dot_dimension_numbers<[1], [0], [0], [1], [0, 0, 1, 1], [], []>} : vector<8x128xf32>, vector<128x256xf32>, vector<8x256xf32> -> vector<8x256xf32>
      %c0_25 = arith.constant 0 : index
      %c0_26 = arith.constant 0 : index
      %39 = vector.load %arg7[%c0_25, %c0_26] : memref<1x256xf32, #tpu.memory_space<vmem>>, vector<1x256xf32>
      %40 = vector.broadcast %39 : vector<1x256xf32> to vector<8x256xf32>
      %41 = arith.addf %38, %40 : vector<8x256xf32>
      %cst_27 = arith.constant dense<0.000000e+00> : vector<256xf32>
      %42 = vector.multi_reduction <add>, %41, %cst_27 [0] : vector<8x256xf32> to vector<256xf32>
      %43 = vector.shape_cast %42 : vector<256xf32> to vector<1x256xf32>
      %cst_28 = arith.constant 8.000000e+00 : f32
      %44 = vector.broadcast %cst_28 : f32 to vector<1x256xf32>
      %45 = arith.divf %43, %44 : vector<1x256xf32>
      %46 = vector.broadcast %45 : vector<1x256xf32> to vector<8x256xf32>
      %47 = arith.subf %41, %46 : vector<8x256xf32>
      %48 = vector.broadcast %45 : vector<1x256xf32> to vector<8x256xf32>
      %49 = arith.subf %41, %48 : vector<8x256xf32>
      %50 = arith.mulf %47, %49 : vector<8x256xf32>
      %cst_29 = arith.constant dense<0.000000e+00> : vector<256xf32>
      %51 = vector.multi_reduction <add>, %50, %cst_29 [0] : vector<8x256xf32> to vector<256xf32>
      %52 = vector.shape_cast %51 : vector<256xf32> to vector<1x256xf32>
      %cst_30 = arith.constant 8.000000e+00 : f32
      %53 = vector.broadcast %cst_30 : f32 to vector<1x256xf32>
      %54 = arith.divf %52, %53 : vector<1x256xf32>
      %55 = vector.broadcast %45 : vector<1x256xf32> to vector<8x256xf32>
      %56 = arith.subf %41, %55 : vector<8x256xf32>
      %cst_31 = arith.constant 9.99999974E-6 : f32
      %57 = vector.broadcast %cst_31 : f32 to vector<1x256xf32>
      %58 = arith.addf %54, %57 : vector<1x256xf32>
      %59 = math.rsqrt %58 : vector<1x256xf32>
      %60 = vector.broadcast %59 : vector<1x256xf32> to vector<8x256xf32>
      %61 = arith.mulf %56, %60 : vector<8x256xf32>
      %62 = vector.extract_strided_slice %61 {offsets = [0, 0], sizes = [8, 128], strides = [1, 1]} : vector<8x256xf32> to vector<8x128xf32>
      %c0_32 = arith.constant 0 : index
      %c0_33 = arith.constant 0 : index
      %63 = vector.load %arg8[%c0_32, %c0_33] : memref<8x256xf32, #tpu.memory_space<vmem>>, vector<8x128xf32>
      tpu.vector_store %arg8[%c0_32, %c0_33], %62 {strides = array<i32>} : memref<8x256xf32, #tpu.memory_space<vmem>>, vector<8x128xf32>,
      %64 = vector.extract_strided_slice %61 {offsets = [0, 128], sizes = [8, 128], strides = [1, 1]} : vector<8x256xf32> to vector<8x128xf32>
      %cst_34 = arith.constant 5.000000e-01 : f32
      %65 = vector.broadcast %cst_34 : f32 to vector<8x128xf32>
      %66 = arith.mulf %65, %64 : vector<8x128xf32>
      %67 = math.exp %66 : vector<8x128xf32>
      %c0_35 = arith.constant 0 : index
      %c128 = arith.constant 128 : index
      %68 = vector.load %arg8[%c0_35, %c128] : memref<8x256xf32, #tpu.memory_space<vmem>>, vector<8x128xf32>
      tpu.vector_store %arg8[%c0_35, %c128], %67 {strides = array<i32>} : memref<8x256xf32, #tpu.memory_space<vmem>>, vector<8x128xf32>,
    } else {
    }
    return
  }
  func.func @transform_0(%arg0: i32) -> (i32, i32) {
    %c0_i32 = arith.constant 0 : i32
    %c0_i32_0 = arith.constant 0 : i32
    return %c0_i32, %arg0 : i32, i32
  }
  func.func @transform_1(%arg0: i32) -> (i32, i32) {
    %c0_i32 = arith.constant 0 : i32
    %c0_i32_0 = arith.constant 0 : i32
    return %arg0, %c0_i32 : i32, i32
  }
  func.func @transform_2(%arg0: i32) -> (i32, i32) {
    %c0_i32 = arith.constant 0 : i32
    %c0_i32_0 = arith.constant 0 : i32
    %c0_i32_1 = arith.constant 0 : i32
    return %c0_i32, %c0_i32_0 : i32, i32
  }
  func.func @transform_3(%arg0: i32) -> (i32, i32) {
    %c0_i32 = arith.constant 0 : i32
    %c0_i32_0 = arith.constant 0 : i32
    %c0_i32_1 = arith.constant 0 : i32
    return %c0_i32, %c0_i32_0 : i32, i32
  }
  func.func @transform_4(%arg0: i32) -> (i32, i32) {
    %c0_i32 = arith.constant 0 : i32
    %c0_i32_0 = arith.constant 0 : i32
    %c0_i32_1 = arith.constant 0 : i32
    return %c0_i32, %c0_i32_0 : i32, i32
  }
  func.func @transform_5(%arg0: i32) -> (i32, i32) {
    %c0_i32 = arith.constant 0 : i32
    %c0_i32_0 = arith.constant 0 : i32
    %c0_i32_1 = arith.constant 0 : i32
    return %c0_i32, %c0_i32_0 : i32, i32
  }
  func.func @transform_6(%arg0: i32) -> (i32, i32) {
    %c0_i32 = arith.constant 0 : i32
    %c0_i32_0 = arith.constant 0 : i32
    %c0_i32_1 = arith.constant 0 : i32
    return %c0_i32, %c0_i32_0 : i32, i32
  }
  func.func @transform_7(%arg0: i32) -> (i32, i32) {
    %c0_i32 = arith.constant 0 : i32
    %c0_i32_0 = arith.constant 0 : i32
    %c0_i32_1 = arith.constant 0 : i32
    return %c0_i32, %c0_i32_0 : i32, i32
  }
}

</mosaic_0001>

<llo_original>
// kernel: encoder_forward.1
$region0: #{encoder_forward.1}
  #allocation0 [shape = 'u32[]', space=smem, size = 0x4, offset = 0x4, fixed_abs, tag = 'smem constant byte address 0x4 - core index']
  #allocation1 [shape = 'u32[144,128]{1,0:T(1,128)}', space=vmem, size = 0x12000, scoped, tag = 'internal scratch']
  #allocation2 [shape = 'f32[8,128]{1,0:T(8,128)}', space=vmem, size = 0x1000, scoped, tag = 'scratch operand']
  %s0 = inlined_call_operand.hbm [shape: f32[8,384], index: 0, kind: input, shape index: {}]
  %s1 = inlined_call_operand.hbm [shape: f32[384,128], index: 1, kind: input, shape index: {}]
  %s2 = inlined_call_operand.vmem [shape: f32[1,128], index: 2, kind: input, shape index: {}]
  %s3 = inlined_call_operand.hbm [shape: f32[128,128], index: 3, kind: input, shape index: {}]
  %s4 = inlined_call_operand.hbm [shape: f32[1,128], index: 4, kind: input, shape index: {}]
  %s5 = inlined_call_operand.hbm [shape: f32[128,256], index: 5, kind: input, shape index: {}]
  %s6 = inlined_call_operand.vmem [shape: f32[1,256], index: 6, kind: input, shape index: {}]
  %s7 = inlined_call_operand.vmem [shape: f32[8,256], index: 7, kind: output, shape index: {}]
  %s8 = sld [smem:[#allocation0]]
  $region89: #{encoder_forward.1} parent=0
    _
  %s10 = ssub.s32 1, %s8
  %s11 = scalar_select 0, %s10, %s8
  $region1: #{encoder_forward.1} parent=0
    #allocation3 [shape = 'u8[8192]{0}', space=vmem, size = 0x2000, scoped, tag = 'input window, operand 0']
    #allocation4 [shape = 's32[2]{0}', space=sflag, size = 0x8, scoped, tag = 'scoped memory for encoder_forward.1']
    #allocation5 [shape = 'u8[131072]{0}', space=vmem, size = 0x20000, scoped, tag = 'input window, operand 1']
    #allocation6 [shape = 's32[2]{0}', space=sflag, size = 0x8, scoped, tag = 'scoped memory for encoder_forward.1']
    #allocation7 [shape = 'u8[65536]{0}', space=vmem, size = 0x10000, scoped, tag = 'input window, operand 3, single buffered']
    #allocation8 [shape = 'u8[512]{0}', space=vmem, size = 0x400, scoped, tag = 'input window, operand 4, single buffered']
    #allocation9 [shape = 's32[1]{0}', space=sflag, size = 0x4, scoped, tag = 'scoped memory for encoder_forward.1']
    #allocation10 [shape = 'u8[131072]{0}', space=vmem, size = 0x20000, scoped, tag = 'input window, operand 5, single buffered']
    %12 = vsyncpa [#allocation4], 0
    %s13 = scalar_lea.sflag [#allocation4], 1
    %14 = vsyncpa %s13, 0
    %15 = vsyncpa [#allocation6], 0
    %s16 = scalar_lea.sflag [#allocation6], 1
    %17 = vsyncpa %s16, 0
    %18 = vsyncpa [#allocation9], 0
    loop: start=0, step=1, limit=5
    $region2: #{encoder_forward.1} parent=1 // loop_pre_header
      _
    $region3: #{encoder_forward.1} parent=1 // loop_header
      %s20 = sphi 0, %s24
      %p21 = scmp.ge.s32.totalorder %s20, 5
      %s30 = sphi 0, %s32
      %s33 = sphi 0, %s30
      %s34 = sphi 0, %s33
      %s50 = sphi 0, %s34
      %s56 = sphi 0, %s58
      %s59 = sphi 0, %s56
      %s60 = sphi 0, %s59
      %s76 = sphi 0, %s60
      %s80 = sphi 0, %s80
      %s82 = sphi 0, %s80
      %s83 = sphi 0, %s82
      %s97 = sphi 0, %s83
      %s101 = sphi 0, %s101
      %s103 = sphi 0, %s101
      %s104 = sphi 0, %s103
      %s118 = sphi 0, %s104
      %s122 = sphi 0, %s122
      %s124 = sphi 0, %s122
      %s125 = sphi 0, %s124
      %s139 = sphi 0, %s125
      %s143 = sphi 0, %s143
      %s145 = sphi 0, %s143
      %s146 = sphi 0, %s145
      %s160 = sphi 0, %s146
      %s164 = sphi 0, %s164
      %s166 = sphi 0, %s164
      %s167 = sphi 0, %s166
      %s181 = sphi 0, %s167
      %s185 = sphi 0, %s185
      %s187 = sphi 0, %s185
      %s188 = sphi 0, %s187
      %s202 = sphi 0, %s188
    $region4: #{encoder_forward.1} parent=1 // loop_header_branch
      %23 = sbr.rel (%p21) target = $region8
    $region5: #{encoder_forward.1} parent=1 // loop_body
      %s25 = ssub.s32 %s20, 1
      %s26 = ssub.s32 %s20, 2
      %s27 = sadd.s32 %s20, 1
      %s28 = ssub.s32 %s20, %s27
      %p29 = scmp.eq.s32.totalorder %s28, 0
      %s31 = sadd.s32 %s30, 1
      %s32 = scalar_select %p29, %s30, %s31
      %p35 = pneg %p29
      %p36 = scmp.eq.s32.totalorder %s20, 2
      %p37 = por %p35, %p36
      %p38 = scmp.ne.s32.totalorder %s30, %s33
      %p39 = scmp.eq.s32.totalorder %s20, 0
      %p40 = por %p38, %p39
      %p41 = scmp.ne.s32.totalorder %s30, %s33
      %p42 = scmp.eq.s32.totalorder %s25, 2
      %p43 = por %p41, %p42
      %p44 = scmp.ne.s32.totalorder %s33, %s34
      %p45 = scmp.eq.s32.totalorder %s25, 0
      %p46 = por %p44, %p45
      %p47 = scmp.ne.s32.totalorder %s33, %s34
      %p48 = scmp.eq.s32.totalorder %s26, 2
      %p49 = por %p47, %p48
      %p51 = scmp.ne.s32.totalorder %s34, %s50
      %p52 = scmp.eq.s32.totalorder %s26, 0
      %p53 = por %p51, %p52
      %s54 = ssub.s32 %s20, %s27
      %p55 = scmp.eq.s32.totalorder %s54, 0
      %s57 = sadd.s32 %s56, 1
      %s58 = scalar_select %p55, %s56, %s57
      %p61 = pneg %p55
      %p62 = scmp.eq.s32.totalorder %s20, 2
      %p63 = por %p61, %p62
      %p64 = scmp.ne.s32.totalorder %s56, %s59
      %p65 = scmp.eq.s32.totalorder %s20, 0
      %p66 = por %p64, %p65
      %p67 = scmp.ne.s32.totalorder %s56, %s59
      %p68 = scmp.eq.s32.totalorder %s25, 2
      %p69 = por %p67, %p68
      %p70 = scmp.ne.s32.totalorder %s59, %s60
      %p71 = scmp.eq.s32.totalorder %s25, 0
      %p72 = por %p70, %p71
      %p73 = scmp.ne.s32.totalorder %s59, %s60
      %p74 = scmp.eq.s32.totalorder %s26, 2
      %p75 = por %p73, %p74
      %p77 = scmp.ne.s32.totalorder %s60, %s76
      %p78 = scmp.eq.s32.totalorder %s26, 0
      %p79 = por %p77, %p78
      %s81 = sadd.s32 %s80, 1
      %p84 = scmp.eq.s32.totalorder %s20, 2
      %p85 = scmp.ne.s32.totalorder %s80, %s82
      %p86 = scmp.eq.s32.totalorder %s20, 0
      %p87 = por %p85, %p86
      %p88 = scmp.ne.s32.totalorder %s80, %s82
      %p89 = scmp.eq.s32.totalorder %s25, 2
      %p90 = por %p88, %p89
      %p91 = scmp.ne.s32.totalorder %s82, %s83
      %p92 = scmp.eq.s32.totalorder %s25, 0
      %p93 = por %p91, %p92
      %p94 = scmp.ne.s32.totalorder %s82, %s83
      %p95 = scmp.eq.s32.totalorder %s26, 2
      %p96 = por %p94, %p95
      %p98 = scmp.ne.s32.totalorder %s83, %s97
      %p99 = scmp.eq.s32.totalorder %s26, 0
      %p100 = por %p98, %p99
      %s102 = sadd.s32 %s101, 1
      %p105 = scmp.eq.s32.totalorder %s20, 2
      %p106 = scmp.ne.s32.totalorder %s101, %s103
      %p107 = scmp.eq.s32.totalorder %s20, 0
      %p108 = por %p106, %p107
      %p109 = scmp.ne.s32.totalorder %s101, %s103
      %p110 = scmp.eq.s32.totalorder %s25, 2
      %p111 = por %p109, %p110
      %p112 = scmp.ne.s32.totalorder %s103, %s104
      %p113 = scmp.eq.s32.totalorder %s25, 0
      %p114 = por %p112, %p113
      %p115 = scmp.ne.s32.totalorder %s103, %s104
      %p116 = scmp.eq.s32.totalorder %s26, 2
      %p117 = por %p115, %p116
      %p119 = scmp.ne.s32.totalorder %s104, %s118
      %p120 = scmp.eq.s32.totalorder %s26, 0
      %p121 = por %p119, %p120
      %s123 = sadd.s32 %s122, 1
      %p126 = scmp.eq.s32.totalorder %s20, 2
      %p127 = scmp.ne.s32.totalorder %s122, %s124
      %p128 = scmp.eq.s32.totalorder %s20, 0
      %p129 = por %p127, %p128
      %p130 = scmp.ne.s32.totalorder %s122, %s124
      %p131 = scmp.eq.s32.totalorder %s25, 2
      %p132 = por %p130, %p131
      %p133 = scmp.ne.s32.totalorder %s124, %s125
      %p134 = scmp.eq.s32.totalorder %s25, 0
      %p135 = por %p133, %p134
      %p136 = scmp.ne.s32.totalorder %s124, %s125
      %p137 = scmp.eq.s32.totalorder %s26, 2
      %p138 = por %p136, %p137
      %p140 = scmp.ne.s32.totalorder %s125, %s139
      %p141 = scmp.eq.s32.totalorder %s26, 0
      %p142 = por %p140, %p141
      %s144 = sadd.s32 %s143, 1
      %p147 = scmp.eq.s32.totalorder %s20, 2
      %p148 = scmp.ne.s32.totalorder %s143, %s145
      %p149 = scmp.eq.s32.totalorder %s20, 0
      %p150 = por %p148, %p149
      %p151 = scmp.ne.s32.totalorder %s143, %s145
      %p152 = scmp.eq.s32.totalorder %s25, 2
      %p153 = por %p151, %p152
      %p154 = scmp.ne.s32.totalorder %s145, %s146
      %p155 = scmp.eq.s32.totalorder %s25, 0
      %p156 = por %p154, %p155
      %p157 = scmp.ne.s32.totalorder %s145, %s146
      %p158 = scmp.eq.s32.totalorder %s26, 2
      %p159 = por %p157, %p158
      %p161 = scmp.ne.s32.totalorder %s146, %s160
      %p162 = scmp.eq.s32.totalorder %s26, 0
      %p163 = por %p161, %p162
      %s165 = sadd.s32 %s164, 1
      %p168 = scmp.eq.s32.totalorder %s20, 2
      %p169 = scmp.ne.s32.totalorder %s164, %s166
      %p170 = scmp.eq.s32.totalorder %s20, 0
      %p171 = por %p169, %p170
      %p172 = scmp.ne.s32.totalorder %s164, %s166
      %p173 = scmp.eq.s32.totalorder %s25, 2
      %p174 = por %p172, %p173
      %p175 = scmp.ne.s32.totalorder %s166, %s167
      %p176 = scmp.eq.s32.totalorder %s25, 0
      %p177 = por %p175, %p176
      %p178 = scmp.ne.s32.totalorder %s166, %s167
      %p179 = scmp.eq.s32.totalorder %s26, 2
      %p180 = por %p178, %p179
      %p182 = scmp.ne.s32.totalorder %s167, %s181
      %p183 = scmp.eq.s32.totalorder %s26, 0
      %p184 = por %p182, %p183
      %s186 = sadd.s32 %s185, 1
      %p189 = scmp.eq.s32.totalorder %s20, 2
      %p190 = scmp.ne.s32.totalorder %s185, %s187
      %p191 = scmp.eq.s32.totalorder %s20, 0
      %p192 = por %p190, %p191
      %p193 = scmp.ne.s32.totalorder %s185, %s187
      %p194 = scmp.eq.s32.totalorder %s25, 2
      %p195 = por %p193, %p194
      %p196 = scmp.ne.s32.totalorder %s187, %s188
      %p197 = scmp.eq.s32.totalorder %s25, 0
      %p198 = por %p196, %p197
      %p199 = scmp.ne.s32.totalorder %s187, %s188
      %p200 = scmp.eq.s32.totalorder %s26, 2
      %p201 = por %p199, %p200
      %p203 = scmp.ne.s32.totalorder %s188, %s202
      %p204 = scmp.eq.s32.totalorder %s26, 0
      %p205 = por %p203, %p204
      %p206 = scmp.le.s32.totalorder 1, %s20
      %p207 = scmp.lt.s32.totalorder %s20, 4
      %p208 = pnand %p206, %p207
      %p209 = pneg %p208
      // Predicated region
      $region9: #{encoder_forward.1} parent=5 // pred_check
        _
      $region10: #{encoder_forward.1} parent=5 // pred_check_branch
        %211 = sbr.rel (%p208) target = $region12
      $region11: #{encoder_forward.1} parent=5 // pred_region
        %s212 = ssub.s32 %s20, 1
        // Predicated region
        $region13: #{encoder_forward.1} parent=11 // pred_check
          %p213 = pneg %p93
        $region14: #{encoder_forward.1} parent=11 // pred_check_branch
          %215 = sbr.rel (%p213) target = $region16
        $region15: #{encoder_forward.1} parent=11 // pred_region
          _
        $region16: #{encoder_forward.1} parent=11 // pred_fallthru
          _
        // Predicated region
        $region17: #{encoder_forward.1} parent=11 // pred_check
          %p216 = pneg %p114
        $region18: #{encoder_forward.1} parent=11 // pred_check_branch
          %218 = sbr.rel (%p216) target = $region20
        $region19: #{encoder_forward.1} parent=11 // pred_region
          %s220 = ssub.s32 2048, 2048
          %221 = vsyncadd [#allocation6], %s220
          %s222 = sshll.u32 [#allocation7], 4
          %s223 = int_to_ptr.vmem [resolvable:$true] %s222
          %228 = dma.hbm_to_vmem [thread:$0]  %s3, 2048, %s223, [#allocation6], 128, 128, 8
        $region20: #{encoder_forward.1} parent=11 // pred_fallthru
          _
        // Predicated region
        $region21: #{encoder_forward.1} parent=11 // pred_check
          %p229 = pneg %p135
        $region22: #{encoder_forward.1} parent=11 // pred_check_branch
          %231 = sbr.rel (%p229) target = $region24
        $region23: #{encoder_forward.1} parent=11 // pred_region
          %s233 = ssub.s32 16, 16
          %234 = vsyncadd [#allocation9], %s233
          %s236 = sshll.u32 [#allocation8], 4
          %s237 = int_to_ptr.vmem [resolvable:$true] %s236
          %239 = dma.hbm_to_vmem [thread:$0]  %s4, 16, %s237, [#allocation9]
        $region24: #{encoder_forward.1} parent=11 // pred_fallthru
          _
        // Predicated region
        $region25: #{encoder_forward.1} parent=11 // pred_check
          %p240 = pneg %p156
        $region26: #{encoder_forward.1} parent=11 // pred_check_branch
          %242 = sbr.rel (%p240) target = $region28
        $region27: #{encoder_forward.1} parent=11 // pred_region
          %s244 = ssub.s32 4096, 4096
          %245 = vsyncadd [#allocation9], %s244
          %s246 = sshll.u32 [#allocation10], 4
          %s247 = int_to_ptr.vmem [resolvable:$true] %s246
          %252 = dma.hbm_to_vmem [thread:$0]  %s5, 4096, %s247, [#allocation9], 256, 256, 16
        $region28: #{encoder_forward.1} parent=11 // pred_fallthru
          _
        // Predicated region
        $region29: #{encoder_forward.1} parent=11 // pred_check
          %p253 = pneg %p177
        $region30: #{encoder_forward.1} parent=11 // pred_check_branch
          %255 = sbr.rel (%p253) target = $region32
        $region31: #{encoder_forward.1} parent=11 // pred_region
          _
        $region32: #{encoder_forward.1} parent=11 // pred_fallthru
          _
      $region12: #{encoder_forward.1} parent=5 // pred_fallthru
        _
      %p256 = scmp.lt.s32.totalorder %s20, 3
      // Predicated region
      $region33: #{encoder_forward.1} parent=5 // pred_check
        %p257 = pneg %p256
      $region34: #{encoder_forward.1} parent=5 // pred_check_branch
        %259 = sbr.rel (%p257) target = $region36
      $region35: #{encoder_forward.1} parent=5 // pred_region
        // Predicated region
        $region37: #{encoder_forward.1} parent=35 // pred_check
          %p260 = pneg %p40
        $region38: #{encoder_forward.1} parent=35 // pred_check_branch
          %262 = sbr.rel (%p260) target = $region40
        $region39: #{encoder_forward.1} parent=35 // pred_region
          %s263 = sand.u32 %s30, 1
          %s264 = scalar_lea.sflag [#allocation4], %s263
          %s265 = sand.u32 %s30, 1
          %s266 = smul.addr %s265, 8
          %s267 = scalar_lea.vmem [#allocation3], %s266
          %s269 = ssub.s32 128, 128
          %270 = vsyncadd %s264, %s269
          %s271 = smul.addr %s20, 128
          %s272 = scalar_lea.hbm %s0, %s271
          %s274 = sshll.u32 %s267, 4
          %s275 = int_to_ptr.vmem [resolvable:$true] %s274
          %277 = dma.hbm_to_vmem [thread:$0]  %s272, 128, %s275, %s264
        $region40: #{encoder_forward.1} parent=35 // pred_fallthru
          _
        // Predicated region
        $region41: #{encoder_forward.1} parent=35 // pred_check
          %p278 = pneg %p66
        $region42: #{encoder_forward.1} parent=35 // pred_check_branch
          %280 = sbr.rel (%p278) target = $region44
        $region43: #{encoder_forward.1} parent=35 // pred_region
          %s281 = sand.u32 %s20, 1
          %s282 = scalar_lea.sflag [#allocation6], %s281
          %s283 = sand.u32 %s56, 1
          %s284 = smul.addr %s283, 128
          %s285 = scalar_lea.vmem [#allocation5], %s284
          %s286 = smul.u32 16, %s20
          %s288 = ssub.s32 2048, 2048
          %289 = vsyncadd %s282, %s288
          %s290 = smul.addr %s286, 128
          %s291 = scalar_lea.hbm %s1, %s290
          %s292 = sshll.u32 %s285, 4
          %s293 = int_to_ptr.vmem [resolvable:$true] %s292
          %298 = dma.hbm_to_vmem [thread:$0]  %s291, 2048, %s293, %s282, 128, 128, 8
        $region44: #{encoder_forward.1} parent=35 // pred_fallthru
          _
      $region36: #{encoder_forward.1} parent=5 // pred_fallthru
        _
      %p299 = scmp.le.s32.totalorder 1, %s20
      %p300 = scmp.lt.s32.totalorder %s20, 4
      %p301 = pnand %p299, %p300
      %p302 = pneg %p301
      // Predicated region
      $region45: #{encoder_forward.1} parent=5 // pred_check
        _
      $region46: #{encoder_forward.1} parent=5 // pred_check_branch
        %304 = sbr.rel (%p301) target = $region48
      $region47: #{encoder_forward.1} parent=5 // pred_region
        %s305 = ssub.s32 %s20, 1
        %s306 = sand.u32 %s33, 1
        %s307 = scalar_lea.sflag [#allocation4], %s306
        %s308 = sand.u32 %s33, 1
        %s309 = smul.addr %s308, 8
        %s310 = scalar_lea.vmem [#allocation3], %s309
        // Predicated region
        $region49: #{encoder_forward.1} parent=47 // pred_check
          %p311 = pneg %p46
        $region50: #{encoder_forward.1} parent=47 // pred_check_branch
          %313 = sbr.rel (%p311) target = $region52
        $region51: #{encoder_forward.1} parent=47 // pred_region
          %314 = dma.done %s307, 128
        $region52: #{encoder_forward.1} parent=47 // pred_fallthru
          _
        %s315 = sand.u32 %s25, 1
        %s316 = scalar_lea.sflag [#allocation6], %s315
        %s317 = sand.u32 %s59, 1
        %s318 = smul.addr %s317, 128
        %s319 = scalar_lea.vmem [#allocation5], %s318
        // Predicated region
        $region53: #{encoder_forward.1} parent=47 // pred_check
          %p320 = pneg %p72
        $region54: #{encoder_forward.1} parent=47 // pred_check_branch
          %322 = sbr.rel (%p320) target = $region56
        $region55: #{encoder_forward.1} parent=47 // pred_region
          %323 = dma.done %s316, 2048
        $region56: #{encoder_forward.1} parent=47 // pred_fallthru
          _
        // Predicated region
        $region57: #{encoder_forward.1} parent=47 // pred_check
          %p324 = pneg %p114
        $region58: #{encoder_forward.1} parent=47 // pred_check_branch
          %326 = sbr.rel (%p324) target = $region60
        $region59: #{encoder_forward.1} parent=47 // pred_region
          %327 = dma.done [#allocation6], 2048
        $region60: #{encoder_forward.1} parent=47 // pred_fallthru
          _
        // Predicated region
        $region61: #{encoder_forward.1} parent=47 // pred_check
          %p328 = pneg %p135
        $region62: #{encoder_forward.1} parent=47 // pred_check_branch
          %330 = sbr.rel (%p328) target = $region64
        $region63: #{encoder_forward.1} parent=47 // pred_region
          %331 = dma.done [#allocation9], 16
        $region64: #{encoder_forward.1} parent=47 // pred_fallthru
          _
        // Predicated region
        $region65: #{encoder_forward.1} parent=47 // pred_check
          %p332 = pneg %p156
        $region66: #{encoder_forward.1} parent=47 // pred_check_branch
          %334 = sbr.rel (%p332) target = $region68
        $region67: #{encoder_forward.1} parent=47 // pred_region
          %335 = dma.done [#allocation9], 4096
        $region68: #{encoder_forward.1} parent=47 // pred_fallthru
          _
        %s336 = sand.u32 %s33, 1
        %s337 = scalar_lea.sflag [#allocation4], %s336
        %s338 = sand.u32 %s33, 1
        %s339 = smul.addr %s338, 8
        %s340 = scalar_lea.vmem [#allocation3], %s339
        %p341 = pneg %p46
        %p342 = pneg %p43
        %s343 = sand.u32 %s25, 1
        %s344 = scalar_lea.sflag [#allocation6], %s343
        %s345 = sand.u32 %s59, 1
        %s346 = smul.addr %s345, 128
        %s347 = scalar_lea.vmem [#allocation5], %s346
        %p348 = pneg %p72
        %p349 = pneg %p69
        %p350 = pneg %p93
        %p351 = pneg %p90
        %p352 = pneg %p114
        %p353 = pneg %p111
        %p354 = pneg %p135
        %p355 = pneg %p132
        %p356 = pneg %p156
        %p357 = pneg %p153
        %p358 = pneg %p177
        %p359 = pneg %p174
        %p360 = pneg %p198
        %p361 = pneg %p195
        %s362 = smul.u32 16, %s25
        %p363 = scmp.eq.s32.totalorder %s25, 0
        // Predicated region
        $region69: #{encoder_forward.1} parent=47 // pred_check
          %p364 = pneg %p363
        $region70: #{encoder_forward.1} parent=47 // pred_check_branch
          %366 = sbr.rel (%p364) target = $region72
        $region71: #{encoder_forward.1} parent=47 // pred_region
          %367 = vst [vmem:[#allocation2] sm:$0xff] 0.0
        $region72: #{encoder_forward.1} parent=47 // pred_fallthru
          _
        %v368 = vld [vmem:[#allocation2] sm:$0xff]
        %v369 = vld [vmem:[%s310] sm:$0xff]
        %v370 = vld [vmem:[%s319] sm:$0xff]
        %v371 = vld [vmem:[%s319 + $0x8] sm:$0xff]
        %v372 = vld [vmem:[%s319 + $0x10] sm:$0xff]
        %v373 = vld [vmem:[%s319 + $0x18] sm:$0xff]
        %v374 = vld [vmem:[%s319 + $0x20] sm:$0xff]
        %v375 = vld [vmem:[%s319 + $0x28] sm:$0xff]
        %v376 = vld [vmem:[%s319 + $0x30] sm:$0xff]
        %v377 = vld [vmem:[%s319 + $0x38] sm:$0xff]
        %v378 = vld [vmem:[%s319 + $0x40] sm:$0xff]
        %v379 = vld [vmem:[%s319 + $0x48] sm:$0xff]
        %v380 = vld [vmem:[%s319 + $0x50] sm:$0xff]
        %v381 = vld [vmem:[%s319 + $0x58] sm:$0xff]
        %v382 = vld [vmem:[%s319 + $0x60] sm:$0xff]
        %v383 = vld [vmem:[%s319 + $0x68] sm:$0xff]
        %v384 = vld [vmem:[%s319 + $0x70] sm:$0xff]
        %v385 = vld [vmem:[%s319 + $0x78] sm:$0xff]
        %386 = vmatprep.subr.mxu0 0.0
        %387 = vmatpush1.msra.mxu0 %v385
        %388 = vmatprep.subr.mxu0 0.0
        %389 = vmatpush1.msra.mxu0 %v384
        %390 = vmatprep.subr.mxu0 0.0
        %391 = vmatpush1.msra.mxu0 %v383
        %392 = vmatprep.subr.mxu0 0.0
        %393 = vmatpush1.msra.mxu0 %v382
        %394 = vmatprep.subr.mxu0 0.0
        %395 = vmatpush1.msra.mxu0 %v381
        %396 = vmatprep.subr.mxu0 0.0
        %397 = vmatpush1.msra.mxu0 %v380
        %398 = vmatprep.subr.mxu0 0.0
        %399 = vmatpush1.msra.mxu0 %v379
        %400 = vmatprep.subr.mxu0 0.0
        %401 = vmatpush1.msra.mxu0 %v378
        %402 = vmatprep.subr.mxu0 0.0
        %403 = vmatpush1.msra.mxu0 %v377
        %404 = vmatprep.subr.mxu0 0.0
        %405 = vmatpush1.msra.mxu0 %v376
        %406 = vmatprep.subr.mxu0 0.0
        %407 = vmatpush1.msra.mxu0 %v375
        %408 = vmatprep.subr.mxu0 0.0
        %409 = vmatpush1.msra.mxu0 %v374
        %410 = vmatprep.subr.mxu0 0.0
        %411 = vmatpush1.msra.mxu0 %v373
        %412 = vmatprep.subr.mxu0 0.0
        %413 = vmatpush1.msra.mxu0 %v372
        %414 = vmatprep.subr.mxu0 0.0
        %415 = vmatpush1.msra.mxu0 %v371
        %416 = vmatprep.subr.mxu0 0.0
        %417 = vmatpush1.msra.mxu0 %v370
        %418 = vmatprep.subr.mxu0 0.0
        %419 = vmatpush2.msra.mxu0 0.0
        %420 = vmatprep.subr.mxu0 0.0
        %421 = vmatpush2.msra.mxu0 0.0
        %422 = vmatprep.subr.mxu0 0.0
        %423 = vmatpush2.msra.mxu0 0.0
        %424 = vmatprep.subr.mxu0 0.0
        %425 = vmatpush2.msra.mxu0 0.0
        %426 = vmatprep.subr.mxu0 0.0
        %427 = vmatpush2.msra.mxu0 0.0
        %428 = vmatprep.subr.mxu0 0.0
        %429 = vmatpush2.msra.mxu0 0.0
        %430 = vmatprep.subr.mxu0 0.0
        %431 = vmatpush2.msra.mxu0 0.0
        %432 = vmatprep.subr.mxu0 0.0
        %433 = vmatpush2.msra.mxu0 0.0
        %434 = vmatprep.subr.mxu0 0.0
        %435 = vmatpush2.msra.mxu0 0.0
        %436 = vmatprep.subr.mxu0 0.0
        %437 = vmatpush2.msra.mxu0 0.0
        %438 = vmatprep.subr.mxu0 0.0
        %439 = vmatpush2.msra.mxu0 0.0
        %440 = vmatprep.subr.mxu0 0.0
        %441 = vmatpush2.msra.mxu0 0.0
        %442 = vmatprep.subr.mxu0 0.0
        %443 = vmatpush2.msra.mxu0 0.0
        %444 = vmatprep.subr.mxu0 0.0
        %445 = vmatpush2.msra.mxu0 0.0
        %446 = vmatprep.subr.mxu0 0.0
        %447 = vmatpush2.msra.mxu0 0.0
        %448 = vmatprep.subr.mxu0 0.0
        %449 = vmatpush2.msra.mxu0 0.0
        %450 = vmatprep.mubr.f32.mxu0 0.0
        %451 = vmatmul.mubr.f32.gmra.mxu0 %v369
        %v452 = vpop.f32.mrf.mxu0
        %v453 = vadd.f32 0.0, %v452
        %v454 = vpop.f32.mrf.mxu0
        %455 = vdwg.mxu0
        %v456 = vadd.f32 %v368, %v453
        %457 = vst [vmem:[#allocation2] sm:$0xff] %v456
        %p458 = scmp.eq.s32.totalorder %s25, 2
        // Predicated region
        $region73: #{encoder_forward.1} parent=47 // pred_check
          %p459 = pneg %p458
        $region74: #{encoder_forward.1} parent=47 // pred_check_branch
          %461 = sbr.rel (%p459) target = $region76
        $region75: #{encoder_forward.1} parent=47 // pred_region
          %v462 = vld [vmem:[#allocation2] sm:$0xff]
          %v463 = vld [vmem:[%s2] sm:$0x1]
          %v465 = vlaneseq
          %v466 = vshrl.u32 %v465, 7
          %v467 = vsub.s32 0, %v466
          %v468 = vrot.slane %v463, %v467
          %v470 = vadd.f32 %v462, %v468
          %v471 = vmax.f32 %v470, 0.0
          %v472 = vand.u32 2147483647, %v470
          %v473 = vsub.f32 0.0, %v472
          %v474 = vmul.f32 %v473, 1.442695
          %v475 = vpow.pop %v474
          %v476 = vadd.f32 %v475, 1.0
          %v477 = vlog2.pop %v476
          %v478 = vmul.f32 %v477, 0.6931472
          %v479 = vmul.f32 -0.5, %v475
          %v480 = vadd.f32 %v479, 1.0
          %v481 = vmul.f32 %v480, %v475
          %v482 = vand.u32 2147483647, %v475
          %vm483 = vcmp.lt.f32.partialorder %v482, 0.0004427343
          %v484 = vsel %vm483, %v481, %v478
          %v485 = vadd.f32 %v471, %v484
          %v486 = vld [vmem:[#allocation7] sm:$0xff]
          %v487 = vld [vmem:[#allocation7 + $0x8] sm:$0xff]
          %v488 = vld [vmem:[#allocation7 + $0x10] sm:$0xff]
          %v489 = vld [vmem:[#allocation7 + $0x18] sm:$0xff]
          %v490 = vld [vmem:[#allocation7 + $0x20] sm:$0xff]
          %v491 = vld [vmem:[#allocation7 + $0x28] sm:$0xff]
          %v492 = vld [vmem:[#allocation7 + $0x30] sm:$0xff]
          %v493 = vld [vmem:[#allocation7 + $0x38] sm:$0xff]
          %v494 = vld [vmem:[#allocation7 + $0x40] sm:$0xff]
          %v495 = vld [vmem:[#allocation7 + $0x48] sm:$0xff]
          %v496 = vld [vmem:[#allocation7 + $0x50] sm:$0xff]
          %v497 = vld [vmem:[#allocation7 + $0x58] sm:$0xff]
          %v498 = vld [vmem:[#allocation7 + $0x60] sm:$0xff]
          %v499 = vld [vmem:[#allocation7 + $0x68] sm:$0xff]
          %v500 = vld [vmem:[#allocation7 + $0x70] sm:$0xff]
          %v501 = vld [vmem:[#allocation7 + $0x78] sm:$0xff]
          %v502 = vld [vmem:[#allocation8] sm:$0x1]
          %v504 = vlaneseq
          %v505 = vshrl.u32 %v504, 7
          %v506 = vsub.s32 0, %v505
          %v507 = vrot.slane %v502, %v506
          %509 = vmatprep.subr.mxu0 0.0
          %510 = vmatpush1.msra.mxu0 %v501
          %511 = vmatprep.subr.mxu0 0.0
          %512 = vmatpush1.msra.mxu0 %v500
          %513 = vmatprep.subr.mxu0 0.0
          %514 = vmatpush1.msra.mxu0 %v499
          %515 = vmatprep.subr.mxu0 0.0
          %516 = vmatpush1.msra.mxu0 %v498
          %517 = vmatprep.subr.mxu0 0.0
          %518 = vmatpush1.msra.mxu0 %v497
          %519 = vmatprep.subr.mxu0 0.0
          %520 = vmatpush1.msra.mxu0 %v496
          %521 = vmatprep.subr.mxu0 0.0
          %522 = vmatpush1.msra.mxu0 %v495
          %523 = vmatprep.subr.mxu0 0.0
          %524 = vmatpush1.msra.mxu0 %v494
          %525 = vmatprep.subr.mxu0 0.0
          %526 = vmatpush1.msra.mxu0 %v493
          %527 = vmatprep.subr.mxu0 0.0
          %528 = vmatpush1.msra.mxu0 %v492
          %529 = vmatprep.subr.mxu0 0.0
          %530 = vmatpush1.msra.mxu0 %v491
          %531 = vmatprep.subr.mxu0 0.0
          %532 = vmatpush1.msra.mxu0 %v490
          %533 = vmatprep.subr.mxu0 0.0
          %534 = vmatpush1.msra.mxu0 %v489
          %535 = vmatprep.subr.mxu0 0.0
          %536 = vmatpush1.msra.mxu0 %v488
          %537 = vmatprep.subr.mxu0 0.0
          %538 = vmatpush1.msra.mxu0 %v487
          %539 = vmatprep.subr.mxu0 0.0
          %540 = vmatpush1.msra.mxu0 %v486
          %541 = vmatprep.subr.mxu0 0.0
          %542 = vmatpush2.msra.mxu0 0.0
          %543 = vmatprep.subr.mxu0 0.0
          %544 = vmatpush2.msra.mxu0 0.0
          %545 = vmatprep.subr.mxu0 0.0
          %546 = vmatpush2.msra.mxu0 0.0
          %547 = vmatprep.subr.mxu0 0.0
          %548 = vmatpush2.msra.mxu0 0.0
          %549 = vmatprep.subr.mxu0 0.0
          %550 = vmatpush2.msra.mxu0 0.0
          %551 = vmatprep.subr.mxu0 0.0
          %552 = vmatpush2.msra.mxu0 0.0
          %553 = vmatprep.subr.mxu0 0.0
          %554 = vmatpush2.msra.mxu0 0.0
          %555 = vmatprep.subr.mxu0 0.0
          %556 = vmatpush2.msra.mxu0 0.0
          %557 = vmatprep.subr.mxu0 0.0
          %558 = vmatpush2.msra.mxu0 0.0
          %559 = vmatprep.subr.mxu0 0.0
          %560 = vmatpush2.msra.mxu0 0.0
          %561 = vmatprep.subr.mxu0 0.0
          %562 = vmatpush2.msra.mxu0 0.0
          %563 = vmatprep.subr.mxu0 0.0
          %564 = vmatpush2.msra.mxu0 0.0
          %565 = vmatprep.subr.mxu0 0.0
          %566 = vmatpush2.msra.mxu0 0.0
          %567 = vmatprep.subr.mxu0 0.0
          %568 = vmatpush2.msra.mxu0 0.0
          %569 = vmatprep.subr.mxu0 0.0
          %570 = vmatpush2.msra.mxu0 0.0
          %571 = vmatprep.subr.mxu0 0.0
          %572 = vmatpush2.msra.mxu0 0.0
          %573 = vmatprep.mubr.f32.mxu0 0.0
          %574 = vmatmul.mubr.f32.gmra.mxu0 %v485
          %v575 = vpop.f32.mrf.mxu0
          %v576 = vadd.f32 %v507, %v575
          %v577 = vpop.f32.mrf.mxu0
          %578 = vdwg.mxu0
          %v579 = vmax.f32 %v576, 0.0
          %v580 = vand.u32 2147483647, %v576
          %v581 = vsub.f32 0.0, %v580
          %v582 = vmul.f32 %v581, 1.442695
          %v583 = vpow.pop %v582
          %v584 = vadd.f32 %v583, 1.0
          %v585 = vlog2.pop %v584
          %v586 = vmul.f32 %v585, 0.6931472
          %v587 = vmul.f32 -0.5, %v583
          %v588 = vadd.f32 %v587, 1.0
          %v589 = vmul.f32 %v588, %v583
          %v590 = vand.u32 2147483647, %v583
          %vm591 = vcmp.lt.f32.partialorder %v590, 0.0004427343
          %v592 = vsel %vm591, %v589, %v586
          %v593 = vadd.f32 %v579, %v592
          %v594 = vld [vmem:[#allocation10] sm:$0xff]
          %v595 = vld [vmem:[#allocation10 + $0x8] sm:$0xff]
          %v596 = vld [vmem:[#allocation10 + $0x10] sm:$0xff]
          %v597 = vld [vmem:[#allocation10 + $0x18] sm:$0xff]
          %v598 = vld [vmem:[#allocation10 + $0x20] sm:$0xff]
          %v599 = vld [vmem:[#allocation10 + $0x28] sm:$0xff]
          %v600 = vld [vmem:[#allocation10 + $0x30] sm:$0xff]
          %v601 = vld [vmem:[#allocation10 + $0x38] sm:$0xff]
          %v602 = vld [vmem:[#allocation10 + $0x40] sm:$0xff]
          %v603 = vld [vmem:[#allocation10 + $0x48] sm:$0xff]
          %v604 = vld [vmem:[#allocation10 + $0x50] sm:$0xff]
          %v605 = vld [vmem:[#allocation10 + $0x58] sm:$0xff]
          %v606 = vld [vmem:[#allocation10 + $0x60] sm:$0xff]
          %v607 = vld [vmem:[#allocation10 + $0x68] sm:$0xff]
          %v608 = vld [vmem:[#allocation10 + $0x70] sm:$0xff]
          %v609 = vld [vmem:[#allocation10 + $0x78] sm:$0xff]
          %v610 = vld [vmem:[#allocation10 + $0x80] sm:$0xff]
          %v611 = vld [vmem:[#allocation10 + $0x88] sm:$0xff]
          %v612 = vld [vmem:[#allocation10 + $0x90] sm:$0xff]
          %v613 = vld [vmem:[#allocation10 + $0x98] sm:$0xff]
          %v614 = vld [vmem:[#allocation10 + $0xa0] sm:$0xff]
          %v615 = vld [vmem:[#allocation10 + $0xa8] sm:$0xff]
          %v616 = vld [vmem:[#allocation10 + $0xb0] sm:$0xff]
          %v617 = vld [vmem:[#allocation10 + $0xb8] sm:$0xff]
          %v618 = vld [vmem:[#allocation10 + $0xc0] sm:$0xff]
          %v619 = vld [vmem:[#allocation10 + $0xc8] sm:$0xff]
          %v620 = vld [vmem:[#allocation10 + $0xd0] sm:$0xff]
          %v621 = vld [vmem:[#allocation10 + $0xd8] sm:$0xff]
          %v622 = vld [vmem:[#allocation10 + $0xe0] sm:$0xff]
          %v623 = vld [vmem:[#allocation10 + $0xe8] sm:$0xff]
          %v624 = vld [vmem:[#allocation10 + $0xf0] sm:$0xff]
          %v625 = vld [vmem:[#allocation10 + $0xf8] sm:$0xff]
          %v626 = vld [vmem:[%s6] sm:$0x3]
          %v628 = vlaneseq
          %v629 = vshrl.u32 %v628, 7
          %v630 = vsub.s32 0, %v629
          %v631 = vrot.slane %v626, %v630
          %v632 = vlaneseq
          %v633 = vshrl.u32 %v632, 7
          %v634 = vsub.s32 1, %v633
          %v635 = vrot.slane %v626, %v634
          %638 = vmatprep.subr.mxu0 %v625
          %639 = vmatpush1.msra.mxu0 %v624
          %640 = vmatprep.subr.mxu0 %v623
          %641 = vmatpush1.msra.mxu0 %v622
          %642 = vmatprep.subr.mxu0 %v621
          %643 = vmatpush1.msra.mxu0 %v620
          %644 = vmatprep.subr.mxu0 %v619
          %645 = vmatpush1.msra.mxu0 %v618
          %646 = vmatprep.subr.mxu0 %v617
          %647 = vmatpush1.msra.mxu0 %v616
          %648 = vmatprep.subr.mxu0 %v615
          %649 = vmatpush1.msra.mxu0 %v614
          %650 = vmatprep.subr.mxu0 %v613
          %651 = vmatpush1.msra.mxu0 %v612
          %652 = vmatprep.subr.mxu0 %v611
          %653 = vmatpush1.msra.mxu0 %v610
          %654 = vmatprep.subr.mxu0 %v609
          %655 = vmatpush1.msra.mxu0 %v608
          %656 = vmatprep.subr.mxu0 %v607
          %657 = vmatpush1.msra.mxu0 %v606
          %658 = vmatprep.subr.mxu0 %v605
          %659 = vmatpush1.msra.mxu0 %v604
          %660 = vmatprep.subr.mxu0 %v603
          %661 = vmatpush1.msra.mxu0 %v602
          %662 = vmatprep.subr.mxu0 %v601
          %663 = vmatpush1.msra.mxu0 %v600
          %664 = vmatprep.subr.mxu0 %v599
          %665 = vmatpush1.msra.mxu0 %v598
          %666 = vmatprep.subr.mxu0 %v597
          %667 = vmatpush1.msra.mxu0 %v596
          %668 = vmatprep.subr.mxu0 %v595
          %669 = vmatpush1.msra.mxu0 %v594
          %670 = vmatprep.subr.mxu0 0.0
          %671 = vmatpush2.msra.mxu0 0.0
          %672 = vmatprep.subr.mxu0 0.0
          %673 = vmatpush2.msra.mxu0 0.0
          %674 = vmatprep.subr.mxu0 0.0
          %675 = vmatpush2.msra.mxu0 0.0
          %676 = vmatprep.subr.mxu0 0.0
          %677 = vmatpush2.msra.mxu0 0.0
          %678 = vmatprep.subr.mxu0 0.0
          %679 = vmatpush2.msra.mxu0 0.0
          %680 = vmatprep.subr.mxu0 0.0
          %681 = vmatpush2.msra.mxu0 0.0
          %682 = vmatprep.subr.mxu0 0.0
          %683 = vmatpush2.msra.mxu0 0.0
          %684 = vmatprep.subr.mxu0 0.0
          %685 = vmatpush2.msra.mxu0 0.0
          %686 = vmatprep.subr.mxu0 0.0
          %687 = vmatpush2.msra.mxu0 0.0
          %688 = vmatprep.subr.mxu0 0.0
          %689 = vmatpush2.msra.mxu0 0.0
          %690 = vmatprep.subr.mxu0 0.0
          %691 = vmatpush2.msra.mxu0 0.0
          %692 = vmatprep.subr.mxu0 0.0
          %693 = vmatpush2.msra.mxu0 0.0
          %694 = vmatprep.subr.mxu0 0.0
          %695 = vmatpush2.msra.mxu0 0.0
          %696 = vmatprep.subr.mxu0 0.0
          %697 = vmatpush2.msra.mxu0 0.0
          %698 = vmatprep.subr.mxu0 0.0
          %699 = vmatpush2.msra.mxu0 0.0
          %700 = vmatprep.subr.mxu0 0.0
          %701 = vmatpush2.msra.mxu0 0.0
          %702 = vmatprep.mubr.f32.mxu0 0.0
          %703 = vmatmul.mubr.f32.gmra.mxu0 %v593
          %v704 = vpop.f32.mrf.mxu0
          %v705 = vadd.f32 %v631, %v704
          %v706 = vpop.f32.mrf.mxu0
          %v707 = vadd.f32 %v635, %v706
          %708 = vdwg.mxu0
          %v709 = vrot.slane %v705, 4
          %v710 = vadd.f32 %v705, %v709
          %v711 = vrot.slane %v710, 2
          %v712 = vadd.f32 %v710, %v711
          %v713 = vrot.slane %v712, 1
          %v714 = vadd.f32 %v712, %v713
          %v715 = vrot.slane %v707, 4
          %v716 = vadd.f32 %v707, %v715
          %v717 = vrot.slane %v716, 2
          %v718 = vadd.f32 %v716, %v717
          %v719 = vrot.slane %v718, 1
          %v720 = vadd.f32 %v718, %v719
          %v721 = vrcp.pop 8.0
          %v722 = vmul.f32 %v714, %v721
          %v723 = vmul.f32 %v720, %v721
          %v724 = vsub.f32 %v705, %v722
          %v725 = vsub.f32 %v707, %v723
          %v726 = vmul.f32 %v724, %v724
          %v727 = vmul.f32 %v725, %v725
          %v728 = vrot.slane %v726, 4
          %v729 = vadd.f32 %v726, %v728
          %v730 = vrot.slane %v729, 2
          %v731 = vadd.f32 %v729, %v730
          %v732 = vrot.slane %v731, 1
          %v733 = vadd.f32 %v731, %v732
          %v734 = vrot.slane %v727, 4
          %v735 = vadd.f32 %v727, %v734
          %v736 = vrot.slane %v735, 2
          %v737 = vadd.f32 %v735, %v736
          %v738 = vrot.slane %v737, 1
          %v739 = vadd.f32 %v737, %v738
          %v740 = vmul.f32 %v733, %v721
          %v741 = vmul.f32 %v739, %v721
          %v742 = vadd.f32 %v740, 1e-05
          %v743 = vadd.f32 %v741, 1e-05
          %v744 = vrsqrt.pop %v742
          %v745 = vrsqrt.pop %v743
          %v746 = vmul.f32 %v724, %v744
          %v747 = vmul.f32 %v725, %v745
          %748 = vst [vmem:[%s7] sm:$0xff] %v746
          %v749 = vmul.f32 %v747, 0.5
          %v750 = vmul.f32 %v749, 1.442695
          %v751 = vpow.pop %v750
          %752 = vst [vmem:[%s7 + $0x8] sm:$0xff] %v751
        $region76: #{encoder_forward.1} parent=47 // pred_fallthru
          _
        // Predicated region
        $region77: #{encoder_forward.1} parent=47 // pred_check
          %p753 = pneg %p195
        $region78: #{encoder_forward.1} parent=47 // pred_check_branch
          %755 = sbr.rel (%p753) target = $region80
        $region79: #{encoder_forward.1} parent=47 // pred_region
          _
        $region80: #{encoder_forward.1} parent=47 // pred_fallthru
          _
        // Predicated region
        $region81: #{encoder_forward.1} parent=47 // pred_check
          %p756 = pneg %p195
        $region82: #{encoder_forward.1} parent=47 // pred_check_branch
          %758 = sbr.rel (%p756) target = $region84
        $region83: #{encoder_forward.1} parent=47 // pred_region
          _
        $region84: #{encoder_forward.1} parent=47 // pred_fallthru
          _
      $region48: #{encoder_forward.1} parent=5 // pred_fallthru
        _
      %p759 = scmp.le.s32.totalorder 2, %s20
      // Predicated region
      $region85: #{encoder_forward.1} parent=5 // pred_check
        %p760 = pneg %p759
      $region86: #{encoder_forward.1} parent=5 // pred_check_branch
        %762 = sbr.rel (%p760) target = $region88
      $region87: #{encoder_forward.1} parent=5 // pred_region
        %s763 = ssub.s32 %s20, 2
      $region88: #{encoder_forward.1} parent=5 // pred_fallthru
        _
    $region6: #{encoder_forward.1} parent=1 // loop_footer
      %s24 = sadd.s32 1, %s20
    $region7: #{encoder_forward.1} parent=1 // loop_footer_branch
      %19 = sbr.rel target = $region3
    $region8: #{encoder_forward.1} parent=1 // loop_exit
      _
    %764 = vsyncpa [#allocation4], 1
    %s765 = scalar_lea.sflag [#allocation4], 1
    %766 = vsyncpa %s765, 1
    %767 = vsyncpa [#allocation6], 1
    %s768 = scalar_lea.sflag [#allocation6], 1
    %769 = vsyncpa %s768, 1
    %770 = vsyncpa [#allocation9], 1

</llo_original>
